<compile_context>
chip_gen: v6e
topology: v6e:2x2x1
jax: 0.10.0
libtpu: 0.0.40
codegen_flags: <defaults>
</compile_context>

<pallas_src>
import functools

import jax
import jax.numpy as jnp
from jax.experimental import pallas as pl
from jax.experimental.pallas import tpu as pltpu


def _round_up(x: int, m: int) -> int:
    return (x + m - 1) // m * m


def _fused_mlp_kernel(x_ref, *refs, layer_dims_pad):
    """refs = (w0, w1, ..., w_{L-1}, bias_stack_ref, o_ref).

    Computes x -> [Linear, ReLU] * (L - 1) -> Linear entirely on-chip.
    Weights are bf16 (zero-padded); biases live in one stacked f32 array.
    Padded lanes stay exactly zero through every layer.
    """
    n_layers = len(layer_dims_pad)
    w_refs = refs[:n_layers]
    b_ref = refs[n_layers]          # (n_layers, max_dout_pad) f32
    o_ref = refs[n_layers + 1]

    h = x_ref[...].astype(jnp.float32)
    for i, (_, dout_p) in enumerate(layer_dims_pad):   # unrolled at trace time
        w = w_refs[i][...]                             # bf16 (din_p, dout_p)
        b = b_ref[i:i + 1, :dout_p]                    # f32  (1, dout_p), static slice
        h = jnp.dot(h.astype(jnp.bfloat16), w,
                    preferred_element_type=jnp.float32) + b
        if i < n_layers - 1:
            h = jnp.maximum(h, 0.0)                    # ReLU (f32, VPU)
    o_ref[...] = h.astype(o_ref.dtype)


def fused_mlp_pallas(x, padded_weights, bias_stack):
    """x: (B, Din) f32. padded_weights: list of bf16 (din_p, dout_p).
    bias_stack: (n_layers, max_dout_pad) f32.
    Returns the PADDED output (B_pad, dout_final_pad); caller slices."""
    B, Din = x.shape
    n_layers = len(padded_weights)
    din0_pad = padded_weights[0].shape[0]
    dout_final_pad = padded_weights[-1].shape[1]
    layer_dims_pad = tuple(w.shape for w in padded_weights)

    # Batch tiling: up to 256 rows per tile (keeps h <= 128 KiB, no spills).
    TB = min(256, _round_up(max(B, 1), 8))
    B_pad = _round_up(B, TB)

    x_pad = jnp.zeros((B_pad, din0_pad), x.dtype).at[:B, :Din].set(x)

    in_specs = [pl.BlockSpec((TB, din0_pad), lambda i: (i, 0))]
    flat_args = [x_pad]
    for w_p in padded_weights:
        # Full-array blocks, constant index_map -> resident across grid steps.
        in_specs.append(pl.BlockSpec(w_p.shape, lambda i: (0, 0)))
        flat_args.append(w_p)
    in_specs.append(pl.BlockSpec(bias_stack.shape, lambda i: (0, 0)))
    flat_args.append(bias_stack)

    kernel = functools.partial(_fused_mlp_kernel, layer_dims_pad=layer_dims_pad)
    out_pad = pl.pallas_call(
        kernel,
        out_shape=jax.ShapeDtypeStruct((B_pad, dout_final_pad), x.dtype),
        grid=(B_pad // TB,),
        in_specs=in_specs,
        out_specs=pl.BlockSpec((TB, dout_final_pad), lambda i: (i, 0)),
        compiler_params=pltpu.CompilerParams(
            dimension_semantics=("parallel",)),
    )(*flat_args)
    return out_pad


def init_params(key, input_dimension, output_dimension,
                num_hidden_neurons, num_hidden_layers):
    """Mirror OurModel._init_weights: N(0, 1) weights and biases.

    Returns (raw_params, padded_weights, bias_stack):
      raw_params[i]     = (w (din, dout) f32, b (dout,) f32)   -- reference
      padded_weights[i] = bf16 (din_p, dout_p), zero-padded
      bias_stack        = f32 (n_layers, max_dout_pad), zero-padded
    Weights stored as (in, out) = PyTorch (out, in) transposed.
    """
    dims = ([input_dimension]
            + [num_hidden_neurons] * (num_hidden_layers + 1)
            + [output_dimension])
    # Intermediate dims: multiple of 8; FINAL output dim: multiple of 128
    # (lane-dense output store).
    dims_pad = [_round_up(d, 8) for d in dims]
    dims_pad[-1] = _round_up(dims[-1], 128)

    n_layers = len(dims) - 1
    max_dout_pad = max(dims_pad[1:])
    bias_stack = jnp.zeros((n_layers, max_dout_pad), jnp.float32)

    raw, padded_w = [], []
    for li, (din, dout) in enumerate(zip(dims[:-1], dims[1:])):
        key, kw, kb = jax.random.split(key, 3)
        w = jax.random.normal(kw, (din, dout), dtype=jnp.float32)
        b = jax.random.normal(kb, (dout,), dtype=jnp.float32)
        raw.append((w, b))
        din_p, dout_p = dims_pad[li], dims_pad[li + 1]
        w_p = (jnp.zeros((din_p, dout_p), jnp.bfloat16)
               .at[:din, :dout].set(w.astype(jnp.bfloat16)))
        padded_w.append(w_p)
        bias_stack = bias_stack.at[li, :dout].set(b)
    return raw, padded_w, bias_stack


def our_model_forward(x, padded_weights, bias_stack, output_dimension):
    """Sequential: [Linear, ReLU] * (num_hidden_layers + 1), then final Linear."""
    B = x.shape[0]
    out_pad = fused_mlp_pallas(x, padded_weights, bias_stack)
    return out_pad[:B, :output_dimension]


if __name__ == "__main__":
    # Small shapes consistent with the module's forward.
    batch = 8
    input_dimension = 32
    num_hidden_neurons = 32
    num_hidden_layers = 2
    output_dimension = 16

    key = jax.random.PRNGKey(0)
    key, kx = jax.random.split(key)
    x = jax.random.normal(kx, (batch, input_dimension), dtype=jnp.float32)

    raw_params, padded_weights, bias_stack = init_params(
        key, input_dimension, output_dimension,
        num_hidden_neurons, num_hidden_layers)

    out = our_model_forward(x, padded_weights, bias_stack, output_dimension)
    jax.block_until_ready(out)

    # Reference uses the SAME bf16-input / f32-accumulate matmul semantics as
    # the kernel, so tolerances stay tight despite the low-precision operands.
    ref = x
    for i, (w, b) in enumerate(raw_params):
        ref = jnp.dot(ref.astype(jnp.bfloat16), w.astype(jnp.bfloat16),
                      preferred_element_type=jnp.float32) + b
        if i < len(raw_params) - 1:
            ref = jnp.maximum(ref, 0.0)

    assert out.shape == (batch, output_dimension)
    assert jnp.allclose(out, ref, rtol=2e-2, atol=1e-2)

    print("KERNEL_OK")
</pallas_src>

<mosaic_0001>
module attributes {stable_mosaic.version = 11 : i64} {
  func.func @_fused_mlp_kernel(%arg0: i32, %arg1: memref<8x32xf32, #tpu.memory_space<vmem>>, %arg2: memref<32x32xbf16, #tpu.memory_space<vmem>>, %arg3: memref<32x32xbf16, #tpu.memory_space<vmem>>, %arg4: memref<32x32xbf16, #tpu.memory_space<vmem>>, %arg5: memref<32x128xbf16, #tpu.memory_space<vmem>>, %arg6: memref<4x128xf32, #tpu.memory_space<vmem>>, %arg7: memref<8x128xf32, #tpu.memory_space<vmem>>) attributes {dimension_semantics = [#tpu.dimension_semantics<parallel>], iteration_bounds = array<i64: 1>, scalar_prefetch = 0 : i64, scratch_operands = 0 : i64, tpu.core_type = #tpu.core_type<tc>, window_params = [{transform_indices = @transform_0, window_bounds = array<i64: 8, 32>}, {pipeline_mode = #tpu.pipeline_mode<synchronous>, transform_indices = @transform_1, window_bounds = array<i64: 32, 32>}, {pipeline_mode = #tpu.pipeline_mode<synchronous>, transform_indices = @transform_2, window_bounds = array<i64: 32, 32>}, {pipeline_mode = #tpu.pipeline_mode<synchronous>, transform_indices = @transform_3, window_bounds = array<i64: 32, 32>}, {pipeline_mode = #tpu.pipeline_mode<synchronous>, transform_indices = @transform_4, window_bounds = array<i64: 32, 128>}, {pipeline_mode = #tpu.pipeline_mode<synchronous>, transform_indices = @transform_5, window_bounds = array<i64: 4, 128>}, {transform_indices = @transform_6, window_bounds = array<i64: 8, 128>}]} {
    %c0 = arith.constant 0 : index
    %c0_0 = arith.constant 0 : index
    %0 = vector.load %arg1[%c0, %c0_0] : memref<8x32xf32, #tpu.memory_space<vmem>>, vector<8x32xf32>
    %c0_1 = arith.constant 0 : index
    %c0_2 = arith.constant 0 : index
    %1 = vector.load %arg2[%c0_1, %c0_2] : memref<32x32xbf16, #tpu.memory_space<vmem>>, vector<32x32xbf16>
    %c0_3 = arith.constant 0 : index
    %c0_4 = arith.constant 0 : index
    %2 = vector.load %arg6[%c0_3, %c0_4] : memref<4x128xf32, #tpu.memory_space<vmem>>, vector<1x32xf32>
    %3 = arith.truncf %0 : vector<8x32xf32> to vector<8x32xbf16>
    %cst = arith.constant dense<0.000000e+00> : vector<8x32xf32>
    %4 = tpu.matmul %3, %1, %cst {dimension_numbers = #tpu.dot_dimension_numbers<[1], [0], [0], [1], [0, 0, 1, 1], [], []>} : vector<8x32xbf16>, vector<32x32xbf16>, vector<8x32xf32> -> vector<8x32xf32>
    %5 = vector.broadcast %2 : vector<1x32xf32> to vector<8x32xf32>
    %6 = arith.addf %4, %5 : vector<8x32xf32>
    %cst_5 = arith.constant 0.000000e+00 : f32
    %7 = vector.broadcast %cst_5 : f32 to vector<8x32xf32>
    %8 = arith.maximumf %6, %7 : vector<8x32xf32>
    %c0_6 = arith.constant 0 : index
    %c0_7 = arith.constant 0 : index
    %9 = vector.load %arg3[%c0_6, %c0_7] : memref<32x32xbf16, #tpu.memory_space<vmem>>, vector<32x32xbf16>
    %c1 = arith.constant 1 : index
    %c0_8 = arith.constant 0 : index
    %10 = vector.load %arg6[%c1, %c0_8] : memref<4x128xf32, #tpu.memory_space<vmem>>, vector<1x32xf32>
    %11 = arith.truncf %8 : vector<8x32xf32> to vector<8x32xbf16>
    %cst_9 = arith.constant dense<0.000000e+00> : vector<8x32xf32>
    %12 = tpu.matmul %11, %9, %cst_9 {dimension_numbers = #tpu.dot_dimension_numbers<[1], [0], [0], [1], [0, 0, 1, 1], [], []>} : vector<8x32xbf16>, vector<32x32xbf16>, vector<8x32xf32> -> vector<8x32xf32>
    %13 = vector.broadcast %10 : vector<1x32xf32> to vector<8x32xf32>
    %14 = arith.addf %12, %13 : vector<8x32xf32>
    %cst_10 = arith.constant 0.000000e+00 : f32
    %15 = vector.broadcast %cst_10 : f32 to vector<8x32xf32>
    %16 = arith.maximumf %14, %15 : vector<8x32xf32>
    %c0_11 = arith.constant 0 : index
    %c0_12 = arith.constant 0 : index
    %17 = vector.load %arg4[%c0_11, %c0_12] : memref<32x32xbf16, #tpu.memory_space<vmem>>, vector<32x32xbf16>
    %c2 = arith.constant 2 : index
    %c0_13 = arith.constant 0 : index
    %18 = vector.load %arg6[%c2, %c0_13] : memref<4x128xf32, #tpu.memory_space<vmem>>, vector<1x32xf32>
    %19 = arith.truncf %16 : vector<8x32xf32> to vector<8x32xbf16>
    %cst_14 = arith.constant dense<0.000000e+00> : vector<8x32xf32>
    %20 = tpu.matmul %19, %17, %cst_14 {dimension_numbers = #tpu.dot_dimension_numbers<[1], [0], [0], [1], [0, 0, 1, 1], [], []>} : vector<8x32xbf16>, vector<32x32xbf16>, vector<8x32xf32> -> vector<8x32xf32>
    %21 = vector.broadcast %18 : vector<1x32xf32> to vector<8x32xf32>
    %22 = arith.addf %20, %21 : vector<8x32xf32>
    %cst_15 = arith.constant 0.000000e+00 : f32
    %23 = vector.broadcast %cst_15 : f32 to vector<8x32xf32>
    %24 = arith.maximumf %22, %23 : vector<8x32xf32>
    %c0_16 = arith.constant 0 : index
    %c0_17 = arith.constant 0 : index
    %25 = vector.load %arg5[%c0_16, %c0_17] : memref<32x128xbf16, #tpu.memory_space<vmem>>, vector<32x128xbf16>
    %c3 = arith.constant 3 : index
    %c0_18 = arith.constant 0 : index
    %26 = vector.load %arg6[%c3, %c0_18] : memref<4x128xf32, #tpu.memory_space<vmem>>, vector<1x128xf32>
    %27 = arith.truncf %24 : vector<8x32xf32> to vector<8x32xbf16>
    %cst_19 = arith.constant dense<0.000000e+00> : vector<8x128xf32>
    %28 = tpu.matmul %27, %25, %cst_19 {dimension_numbers = #tpu.dot_dimension_numbers<[1], [0], [0], [1], [0, 0, 1, 1], [], []>} : vector<8x32xbf16>, vector<32x128xbf16>, vector<8x128xf32> -> vector<8x128xf32>
    %29 = vector.broadcast %26 : vector<1x128xf32> to vector<8x128xf32>
    %30 = arith.addf %28, %29 : vector<8x128xf32>
    %c0_20 = arith.constant 0 : index
    %c0_21 = arith.constant 0 : index
    %31 = vector.load %arg7[%c0_20, %c0_21] : memref<8x128xf32, #tpu.memory_space<vmem>>, vector<8x128xf32>
    tpu.vector_store %arg7[%c0_20, %c0_21], %30 {strides = array<i32>} : memref<8x128xf32, #tpu.memory_space<vmem>>, vector<8x128xf32>,
    return
  }
  func.func @transform_0(%arg0: i32) -> (i32, i32) {
    %c0_i32 = arith.constant 0 : i32
    %c0_i32_0 = arith.constant 0 : i32
    return %arg0, %c0_i32 : i32, i32
  }
  func.func @transform_1(%arg0: i32) -> (i32, i32) {
    %c0_i32 = arith.constant 0 : i32
    %c0_i32_0 = arith.constant 0 : i32
    %c0_i32_1 = arith.constant 0 : i32
    return %c0_i32, %c0_i32_0 : i32, i32
  }
  func.func @transform_2(%arg0: i32) -> (i32, i32) {
    %c0_i32 = arith.constant 0 : i32
    %c0_i32_0 = arith.constant 0 : i32
    %c0_i32_1 = arith.constant 0 : i32
    return %c0_i32, %c0_i32_0 : i32, i32
  }
  func.func @transform_3(%arg0: i32) -> (i32, i32) {
    %c0_i32 = arith.constant 0 : i32
    %c0_i32_0 = arith.constant 0 : i32
    %c0_i32_1 = arith.constant 0 : i32
    return %c0_i32, %c0_i32_0 : i32, i32
  }
  func.func @transform_4(%arg0: i32) -> (i32, i32) {
    %c0_i32 = arith.constant 0 : i32
    %c0_i32_0 = arith.constant 0 : i32
    %c0_i32_1 = arith.constant 0 : i32
    return %c0_i32, %c0_i32_0 : i32, i32
  }
  func.func @transform_5(%arg0: i32) -> (i32, i32) {
    %c0_i32 = arith.constant 0 : i32
    %c0_i32_0 = arith.constant 0 : i32
    %c0_i32_1 = arith.constant 0 : i32
    return %c0_i32, %c0_i32_0 : i32, i32
  }
  func.func @transform_6(%arg0: i32) -> (i32, i32) {
    %c0_i32 = arith.constant 0 : i32
    %c0_i32_0 = arith.constant 0 : i32
    return %arg0, %c0_i32 : i32, i32
  }
}

</mosaic_0001>

<llo_original>
// kernel: tpu_custom_call.1
$region0: #{tpu_custom_call.1}
  #allocation0 [shape = 'u32[]', space=smem, size = 0x4, offset = 0x4, fixed_abs, tag = 'smem constant byte address 0x4 - core index']
  #allocation1 [shape = 'u32[144,128]{1,0:T(1,128)}', space=vmem, size = 0x12000, scoped, tag = 'internal scratch']
  %s0 = inlined_call_operand.hbm [shape: f32[8,32], index: 0, kind: input, shape index: {}]
  %s1 = inlined_call_operand.hbm [shape: bf16[32,32], index: 1, kind: input, shape index: {}]
  %s2 = inlined_call_operand.hbm [shape: bf16[32,32], index: 2, kind: input, shape index: {}]
  %s3 = inlined_call_operand.hbm [shape: bf16[32,32], index: 3, kind: input, shape index: {}]
  %s4 = inlined_call_operand.hbm [shape: bf16[32,128], index: 4, kind: input, shape index: {}]
  %s5 = inlined_call_operand.vmem [shape: f32[4,128], index: 5, kind: input, shape index: {}]
  %s6 = inlined_call_operand.hbm [shape: f32[8,128], index: 6, kind: output, shape index: {}]
  %s7 = sld [smem:[#allocation0]]
  $region54: #{tpu_custom_call.1} parent=0
    _
  %s9 = ssub.s32 1, %s7
  %s10 = scalar_select 0, %s9, %s7
  $region1: #{tpu_custom_call.1} parent=0
    #allocation2 [shape = 'u8[4096]{0}', space=vmem, size = 0x1000, scoped, tag = 'input window, operand 0, single buffered']
    #allocation3 [shape = 's32[1]{0}', space=sflag, size = 0x4, scoped, tag = 'scoped memory for tpu_custom_call.1']
    #allocation4 [shape = 's32[1]{0}', space=sflag, size = 0x4, scoped, tag = 'scoped memory for tpu_custom_call.1']
    #allocation5 [shape = 'u8[8192]{0}', space=vmem, size = 0x2000, scoped, tag = 'input window, operand 1, single buffered']
    #allocation6 [shape = 's32[1]{0}', space=sflag, size = 0x4, scoped, tag = 'scoped memory for tpu_custom_call.1']
    #allocation7 [shape = 'u8[8192]{0}', space=vmem, size = 0x2000, scoped, tag = 'input window, operand 2, single buffered']
    #allocation8 [shape = 'u8[8192]{0}', space=vmem, size = 0x2000, scoped, tag = 'input window, operand 3, single buffered']
    #allocation9 [shape = 's32[1]{0}', space=sflag, size = 0x4, scoped, tag = 'scoped memory for tpu_custom_call.1']
    #allocation10 [shape = 'u8[8192]{0}', space=vmem, size = 0x2000, scoped, tag = 'input window, operand 4, single buffered']
    #allocation11 [shape = 'u8[4096]{0}', space=vmem, size = 0x1000, scoped, tag = 'output window, operand 0, single buffered']
    %11 = vsyncpa [#allocation3], 0
    %12 = vsyncpa [#allocation6], 0
    %13 = vsyncpa [#allocation9], 0
    %14 = vsyncpa [#allocation4], 0
    // Predicated region
    $region2: #{tpu_custom_call.1} parent=1 // pred_check
      _
    $region3: #{tpu_custom_call.1} parent=1 // pred_check_branch
      %16 = sbr.rel (0) target = $region5
    $region4: #{tpu_custom_call.1} parent=1 // pred_region
      %s18 = ssub.s32 128, 128
      %19 = vsyncadd [#allocation3], %s18
      %s21 = sshll.u32 [#allocation2], 4
      %s22 = int_to_ptr.vmem [resolvable:$true] %s21
      %24 = dma.hbm_to_vmem [thread:$0]  %s0, 128, %s22, [#allocation3]
    $region5: #{tpu_custom_call.1} parent=1 // pred_fallthru
      _
    // Predicated region
    $region6: #{tpu_custom_call.1} parent=1 // pred_check
      _
    $region7: #{tpu_custom_call.1} parent=1 // pred_check_branch
      %26 = sbr.rel (0) target = $region9
    $region8: #{tpu_custom_call.1} parent=1 // pred_region
      %s28 = ssub.s32 256, 256
      %29 = vsyncadd [#allocation6], %s28
      %s30 = sshll.u32 [#allocation5], 4
      %s31 = int_to_ptr.vmem [resolvable:$true] %s30
      %36 = dma.hbm_to_vmem [thread:$0]  %s1, 256, %s31, [#allocation6], 64, 64, 4
    $region9: #{tpu_custom_call.1} parent=1 // pred_fallthru
      _
    // Predicated region
    $region10: #{tpu_custom_call.1} parent=1 // pred_check
      _
    $region11: #{tpu_custom_call.1} parent=1 // pred_check_branch
      %38 = sbr.rel (0) target = $region13
    $region12: #{tpu_custom_call.1} parent=1 // pred_region
      %s40 = ssub.s32 256, 256
      %41 = vsyncadd [#allocation6], %s40
      %s42 = sshll.u32 [#allocation7], 4
      %s43 = int_to_ptr.vmem [resolvable:$true] %s42
      %48 = dma.hbm_to_vmem [thread:$0]  %s2, 256, %s43, [#allocation6], 64, 64, 4
    $region13: #{tpu_custom_call.1} parent=1 // pred_fallthru
      _
    // Predicated region
    $region14: #{tpu_custom_call.1} parent=1 // pred_check
      _
    $region15: #{tpu_custom_call.1} parent=1 // pred_check_branch
      %50 = sbr.rel (0) target = $region17
    $region16: #{tpu_custom_call.1} parent=1 // pred_region
      %s52 = ssub.s32 256, 256
      %53 = vsyncadd [#allocation9], %s52
      %s54 = sshll.u32 [#allocation8], 4
      %s55 = int_to_ptr.vmem [resolvable:$true] %s54
      %60 = dma.hbm_to_vmem [thread:$0]  %s3, 256, %s55, [#allocation9], 64, 64, 4
    $region17: #{tpu_custom_call.1} parent=1 // pred_fallthru
      _
    // Predicated region
    $region18: #{tpu_custom_call.1} parent=1 // pred_check
      _
    $region19: #{tpu_custom_call.1} parent=1 // pred_check_branch
      %62 = sbr.rel (0) target = $region21
    $region20: #{tpu_custom_call.1} parent=1 // pred_region
      %s64 = ssub.s32 256, 256
      %65 = vsyncadd [#allocation9], %s64
      %s66 = sshll.u32 [#allocation10], 4
      %s67 = int_to_ptr.vmem [resolvable:$true] %s66
      %72 = dma.hbm_to_vmem [thread:$0]  %s4, 256, %s67, [#allocation9], 64, 64, 4
    $region21: #{tpu_custom_call.1} parent=1 // pred_fallthru
      _
    // Predicated region
    $region22: #{tpu_custom_call.1} parent=1 // pred_check
      _
    $region23: #{tpu_custom_call.1} parent=1 // pred_check_branch
      %74 = sbr.rel (0) target = $region25
    $region24: #{tpu_custom_call.1} parent=1 // pred_region
      _
    $region25: #{tpu_custom_call.1} parent=1 // pred_fallthru
      _
    // Predicated region
    $region26: #{tpu_custom_call.1} parent=1 // pred_check
      _
    $region27: #{tpu_custom_call.1} parent=1 // pred_check_branch
      %76 = sbr.rel (0) target = $region29
    $region28: #{tpu_custom_call.1} parent=1 // pred_region
      %77 = dma.done [#allocation3], 128
    $region29: #{tpu_custom_call.1} parent=1 // pred_fallthru
      _
    // Predicated region
    $region30: #{tpu_custom_call.1} parent=1 // pred_check
      _
    $region31: #{tpu_custom_call.1} parent=1 // pred_check_branch
      %79 = sbr.rel (0) target = $region33
    $region32: #{tpu_custom_call.1} parent=1 // pred_region
      %80 = dma.done [#allocation6], 256
    $region33: #{tpu_custom_call.1} parent=1 // pred_fallthru
      _
    // Predicated region
    $region34: #{tpu_custom_call.1} parent=1 // pred_check
      _
    $region35: #{tpu_custom_call.1} parent=1 // pred_check_branch
      %82 = sbr.rel (0) target = $region37
    $region36: #{tpu_custom_call.1} parent=1 // pred_region
      %83 = dma.done [#allocation6], 256
    $region37: #{tpu_custom_call.1} parent=1 // pred_fallthru
      _
    // Predicated region
    $region38: #{tpu_custom_call.1} parent=1 // pred_check
      _
    $region39: #{tpu_custom_call.1} parent=1 // pred_check_branch
      %85 = sbr.rel (0) target = $region41
    $region40: #{tpu_custom_call.1} parent=1 // pred_region
      %86 = dma.done [#allocation9], 256
    $region41: #{tpu_custom_call.1} parent=1 // pred_fallthru
      _
    // Predicated region
    $region42: #{tpu_custom_call.1} parent=1 // pred_check
      _
    $region43: #{tpu_custom_call.1} parent=1 // pred_check_branch
      %88 = sbr.rel (0) target = $region45
    $region44: #{tpu_custom_call.1} parent=1 // pred_region
      %89 = dma.done [#allocation9], 256
    $region45: #{tpu_custom_call.1} parent=1 // pred_fallthru
      _
    %v91 = vld [vmem:[#allocation2] sm:$0xff]
    %v92 = vld [vmem:[#allocation5] sm:$0xf]
    %v93 = vld [vmem:[#allocation5 + $0x4] sm:$0xf]
    %v94 = vld [vmem:[#allocation5 + $0x8] sm:$0xf]
    %v95 = vld [vmem:[#allocation5 + $0xc] sm:$0xf]
    %v96 = vld [vmem:[%s5] sm:$0x1]
    %v97 = vpack.c.bf16 %v91, %v91
    %v98 = vlaneseq
    %v99 = vshrl.u32 %v98, 7
    %v100 = vsub.s32 0, %v99
    %v101 = vrot.slane %v96, %v100
    %v106 = vunpack.c.l.b16 %v92
    %v107 = vunpack.c.l.b16 %v93
    %v108 = vunpack.c.l.b16 %v94
    %v109 = vunpack.c.l.b16 %v95
    %v110 = vpack.c.b16 %v107, %v106
    %v111 = vpack.c.b16 %v109, %v108
    %vm114 = vcmask 261120
    %v116 = vsel %vm114, %v97, 0
    %118 = vmatprep.subr.bf16.mxu0 0
    %119 = vmatpush1.bf16.msra.mxu0 0
    %120 = vmatprep.subr.bf16.mxu0 0
    %121 = vmatpush1.bf16.msra.mxu0 0
    %122 = vmatprep.subr.bf16.mxu0 0
    %123 = vmatpush1.bf16.msra.mxu0 0
    %124 = vmatprep.subr.bf16.mxu0 0
    %125 = vmatpush1.bf16.msra.mxu0 0
    %126 = vmatprep.subr.bf16.mxu0 0
    %127 = vmatpush1.bf16.msra.mxu0 0
    %128 = vmatprep.subr.bf16.mxu0 0
    %129 = vmatpush1.bf16.msra.mxu0 0
    %130 = vmatprep.subr.bf16.mxu0 0
    %131 = vmatpush1.bf16.msra.mxu0 %v111
    %132 = vmatprep.subr.bf16.mxu0 0
    %133 = vmatpush1.bf16.msra.mxu0 %v110
    %134 = vmatprep.subr.bf16.mxu0 0
    %135 = vmatpush2.bf16.msra.mxu0 0
    %136 = vmatprep.subr.bf16.mxu0 0
    %137 = vmatpush2.bf16.msra.mxu0 0
    %138 = vmatprep.subr.bf16.mxu0 0
    %139 = vmatpush2.bf16.msra.mxu0 0
    %140 = vmatprep.subr.bf16.mxu0 0
    %141 = vmatpush2.bf16.msra.mxu0 0
    %142 = vmatprep.subr.bf16.mxu0 0
    %143 = vmatpush2.bf16.msra.mxu0 0
    %144 = vmatprep.subr.bf16.mxu0 0
    %145 = vmatpush2.bf16.msra.mxu0 0
    %146 = vmatprep.subr.bf16.mxu0 0
    %147 = vmatpush2.bf16.msra.mxu0 0
    %148 = vmatprep.subr.bf16.mxu0 0
    %149 = vmatpush2.bf16.msra.mxu0 0
    %150 = vmatprep.mubr.bf16.mxu0 0
    %151 = vmatmul.mubr.bf16.gmra.mxu0 %v116
    %v152 = vpop.f32.mrf.mxu0
    %v153 = vadd.f32 %v101, %v152
    %v154 = vpop.f32.mrf.mxu0
    %v155 = vpop.f32.mrf.mxu0
    %v156 = vpop.f32.mrf.mxu0
    %157 = vdwg.mxu0
    %v158 = vmax.f32 %v153, 0.0
    %v159 = vld [vmem:[#allocation7] sm:$0xf]
    %v160 = vld [vmem:[#allocation7 + $0x4] sm:$0xf]
    %v161 = vld [vmem:[#allocation7 + $0x8] sm:$0xf]
    %v162 = vld [vmem:[#allocation7 + $0xc] sm:$0xf]
    %v163 = vld [vmem:[%s5 + $0x1] sm:$0x1]
    %v164 = vpack.c.bf16 %v158, %v158
    %v165 = vlaneseq
    %v166 = vshrl.u32 %v165, 7
    %v167 = vsub.s32 0, %v166
    %v168 = vrot.slane %v163, %v167
    %v173 = vunpack.c.l.b16 %v159
    %v174 = vunpack.c.l.b16 %v160
    %v175 = vunpack.c.l.b16 %v161
    %v176 = vunpack.c.l.b16 %v162
    %v177 = vpack.c.b16 %v174, %v173
    %v178 = vpack.c.b16 %v176, %v175
    %v182 = vsel %vm114, %v164, 0
    %184 = vmatprep.subr.bf16.mxu0 0
    %185 = vmatpush1.bf16.msra.mxu0 0
    %186 = vmatprep.subr.bf16.mxu0 0
    %187 = vmatpush1.bf16.msra.mxu0 0
    %188 = vmatprep.subr.bf16.mxu0 0
    %189 = vmatpush1.bf16.msra.mxu0 0
    %190 = vmatprep.subr.bf16.mxu0 0
    %191 = vmatpush1.bf16.msra.mxu0 0
    %192 = vmatprep.subr.bf16.mxu0 0
    %193 = vmatpush1.bf16.msra.mxu0 0
    %194 = vmatprep.subr.bf16.mxu0 0
    %195 = vmatpush1.bf16.msra.mxu0 0
    %196 = vmatprep.subr.bf16.mxu0 0
    %197 = vmatpush1.bf16.msra.mxu0 %v178
    %198 = vmatprep.subr.bf16.mxu0 0
    %199 = vmatpush1.bf16.msra.mxu0 %v177
    %200 = vmatprep.subr.bf16.mxu0 0
    %201 = vmatpush2.bf16.msra.mxu0 0
    %202 = vmatprep.subr.bf16.mxu0 0
    %203 = vmatpush2.bf16.msra.mxu0 0
    %204 = vmatprep.subr.bf16.mxu0 0
    %205 = vmatpush2.bf16.msra.mxu0 0
    %206 = vmatprep.subr.bf16.mxu0 0
    %207 = vmatpush2.bf16.msra.mxu0 0
    %208 = vmatprep.subr.bf16.mxu0 0
    %209 = vmatpush2.bf16.msra.mxu0 0
    %210 = vmatprep.subr.bf16.mxu0 0
    %211 = vmatpush2.bf16.msra.mxu0 0
    %212 = vmatprep.subr.bf16.mxu0 0
    %213 = vmatpush2.bf16.msra.mxu0 0
    %214 = vmatprep.subr.bf16.mxu0 0
    %215 = vmatpush2.bf16.msra.mxu0 0
    %216 = vmatprep.mubr.bf16.mxu0 0
    %217 = vmatmul.mubr.bf16.gmra.mxu0 %v182
    %v218 = vpop.f32.mrf.mxu0
    %v219 = vadd.f32 %v168, %v218
    %v220 = vpop.f32.mrf.mxu0
    %v221 = vpop.f32.mrf.mxu0
    %v222 = vpop.f32.mrf.mxu0
    %223 = vdwg.mxu0
    %v224 = vmax.f32 %v219, 0.0
    %v225 = vld [vmem:[#allocation8] sm:$0xf]
    %v226 = vld [vmem:[#allocation8 + $0x4] sm:$0xf]
    %v227 = vld [vmem:[#allocation8 + $0x8] sm:$0xf]
    %v228 = vld [vmem:[#allocation8 + $0xc] sm:$0xf]
    %v229 = vld [vmem:[%s5 + $0x2] sm:$0x1]
    %v230 = vpack.c.bf16 %v224, %v224
    %v231 = vlaneseq
    %v232 = vshrl.u32 %v231, 7
    %v233 = vsub.s32 0, %v232
    %v234 = vrot.slane %v229, %v233
    %v239 = vunpack.c.l.b16 %v225
    %v240 = vunpack.c.l.b16 %v226
    %v241 = vunpack.c.l.b16 %v227
    %v242 = vunpack.c.l.b16 %v228
    %v243 = vpack.c.b16 %v240, %v239
    %v244 = vpack.c.b16 %v242, %v241
    %v248 = vsel %vm114, %v230, 0
    %250 = vmatprep.subr.bf16.mxu0 0
    %251 = vmatpush1.bf16.msra.mxu0 0
    %252 = vmatprep.subr.bf16.mxu0 0
    %253 = vmatpush1.bf16.msra.mxu0 0
    %254 = vmatprep.subr.bf16.mxu0 0
    %255 = vmatpush1.bf16.msra.mxu0 0
    %256 = vmatprep.subr.bf16.mxu0 0
    %257 = vmatpush1.bf16.msra.mxu0 0
    %258 = vmatprep.subr.bf16.mxu0 0
    %259 = vmatpush1.bf16.msra.mxu0 0
    %260 = vmatprep.subr.bf16.mxu0 0
    %261 = vmatpush1.bf16.msra.mxu0 0
    %262 = vmatprep.subr.bf16.mxu0 0
    %263 = vmatpush1.bf16.msra.mxu0 %v244
    %264 = vmatprep.subr.bf16.mxu0 0
    %265 = vmatpush1.bf16.msra.mxu0 %v243
    %266 = vmatprep.subr.bf16.mxu0 0
    %267 = vmatpush2.bf16.msra.mxu0 0
    %268 = vmatprep.subr.bf16.mxu0 0
    %269 = vmatpush2.bf16.msra.mxu0 0
    %270 = vmatprep.subr.bf16.mxu0 0
    %271 = vmatpush2.bf16.msra.mxu0 0
    %272 = vmatprep.subr.bf16.mxu0 0
    %273 = vmatpush2.bf16.msra.mxu0 0
    %274 = vmatprep.subr.bf16.mxu0 0
    %275 = vmatpush2.bf16.msra.mxu0 0
    %276 = vmatprep.subr.bf16.mxu0 0
    %277 = vmatpush2.bf16.msra.mxu0 0
    %278 = vmatprep.subr.bf16.mxu0 0
    %279 = vmatpush2.bf16.msra.mxu0 0
    %280 = vmatprep.subr.bf16.mxu0 0
    %281 = vmatpush2.bf16.msra.mxu0 0
    %282 = vmatprep.mubr.bf16.mxu0 0
    %283 = vmatmul.mubr.bf16.gmra.mxu0 %v248
    %v284 = vpop.f32.mrf.mxu0
    %v285 = vadd.f32 %v234, %v284
    %v286 = vpop.f32.mrf.mxu0
    %v287 = vpop.f32.mrf.mxu0
    %v288 = vpop.f32.mrf.mxu0
    %289 = vdwg.mxu0
    %v290 = vmax.f32 %v285, 0.0
    %v291 = vld [vmem:[#allocation10] sm:$0xf]
    %v292 = vld [vmem:[#allocation10 + $0x4] sm:$0xf]
    %v293 = vld [vmem:[#allocation10 + $0x8] sm:$0xf]
    %v294 = vld [vmem:[#allocation10 + $0xc] sm:$0xf]
    %v295 = vld [vmem:[%s5 + $0x3] sm:$0x1]
    %v296 = vpack.c.bf16 %v290, %v290
    %v297 = vlaneseq
    %v298 = vshrl.u32 %v297, 7
    %v299 = vsub.s32 0, %v298
    %v300 = vrot.slane %v295, %v299
    %v305 = vunpack.c.l.b16 %v291
    %v306 = vunpack.c.l.b16 %v292
    %v307 = vunpack.c.l.b16 %v293
    %v308 = vunpack.c.l.b16 %v294
    %v309 = vpack.c.b16 %v306, %v305
    %v310 = vpack.c.b16 %v308, %v307
    %v314 = vsel %vm114, %v296, 0
    %316 = vmatprep.subr.bf16.mxu0 0
    %317 = vmatpush1.bf16.msra.mxu0 0
    %318 = vmatprep.subr.bf16.mxu0 0
    %319 = vmatpush1.bf16.msra.mxu0 0
    %320 = vmatprep.subr.bf16.mxu0 0
    %321 = vmatpush1.bf16.msra.mxu0 0
    %322 = vmatprep.subr.bf16.mxu0 0
    %323 = vmatpush1.bf16.msra.mxu0 0
    %324 = vmatprep.subr.bf16.mxu0 0
    %325 = vmatpush1.bf16.msra.mxu0 0
    %326 = vmatprep.subr.bf16.mxu0 0
    %327 = vmatpush1.bf16.msra.mxu0 0
    %328 = vmatprep.subr.bf16.mxu0 0
    %329 = vmatpush1.bf16.msra.mxu0 %v310
    %330 = vmatprep.subr.bf16.mxu0 0
    %331 = vmatpush1.bf16.msra.mxu0 %v309
    %332 = vmatprep.subr.bf16.mxu0 0
    %333 = vmatpush2.bf16.msra.mxu0 0
    %334 = vmatprep.subr.bf16.mxu0 0
    %335 = vmatpush2.bf16.msra.mxu0 0
    %336 = vmatprep.subr.bf16.mxu0 0
    %337 = vmatpush2.bf16.msra.mxu0 0
    %338 = vmatprep.subr.bf16.mxu0 0
    %339 = vmatpush2.bf16.msra.mxu0 0
    %340 = vmatprep.subr.bf16.mxu0 0
    %341 = vmatpush2.bf16.msra.mxu0 0
    %342 = vmatprep.subr.bf16.mxu0 0
    %343 = vmatpush2.bf16.msra.mxu0 0
    %344 = vmatprep.subr.bf16.mxu0 0
    %345 = vmatpush2.bf16.msra.mxu0 0
    %346 = vmatprep.subr.bf16.mxu0 0
    %347 = vmatpush2.bf16.msra.mxu0 0
    %348 = vmatprep.mubr.bf16.mxu0 0
    %349 = vmatmul.mubr.bf16.gmra.mxu0 %v314
    %v350 = vpop.f32.mrf.mxu0
    %v351 = vadd.f32 %v300, %v350
    %v352 = vpop.f32.mrf.mxu0
    %v353 = vpop.f32.mrf.mxu0
    %v354 = vpop.f32.mrf.mxu0
    %355 = vdwg.mxu0
    %356 = vst [vmem:[#allocation11] sm:$0xff] %v351
    // Predicated region
    $region46: #{tpu_custom_call.1} parent=1 // pred_check
      _
    $region47: #{tpu_custom_call.1} parent=1 // pred_check_branch
      %358 = sbr.rel (0) target = $region49
    $region48: #{tpu_custom_call.1} parent=1 // pred_region
      %s360 = ssub.s32 128, 128
      %361 = vsyncadd [#allocation4], %s360
      %s363 = sshll.u32 [#allocation11], 4
      %s364 = int_to_ptr.vmem [resolvable:$true] %s363
      %366 = dma.vmem_to_hbm [thread:$0]  %s364, 128, %s6, [#allocation4]
    $region49: #{tpu_custom_call.1} parent=1 // pred_fallthru
      _
    // Predicated region
    $region50: #{tpu_custom_call.1} parent=1 // pred_check
      _
    $region51: #{tpu_custom_call.1} parent=1 // pred_check_branch
      %368 = sbr.rel (0) target = $region53
    $region52: #{tpu_custom_call.1} parent=1 // pred_region
      %369 = dma.done [#allocation4], 128
    $region53: #{tpu_custom_call.1} parent=1 // pred_fallthru
      _
    %370 = vsyncpa [#allocation3], 1
    %371 = vsyncpa [#allocation6], 1
    %372 = vsyncpa [#allocation9], 1
    %373 = vsyncpa [#allocation4], 1

</llo_original>
